<compile_context>
chip_gen: v6e
topology: v6e:2x2x1
jax: 0.10.0
libtpu: 0.0.40
codegen_flags: <defaults>
</compile_context>

<pallas_src>
import math

import jax
import jax.numpy as jnp
from jax.experimental import pallas as pl
from jax.experimental.pallas import tpu as pltpu


def make_positional_encoding_table(d_model: int, max_len: int = 5,
                                   dtype=jnp.float32) -> jax.Array:
    """Deterministic buffer setup (matches PyTorch __init__)."""
    position = jnp.arange(max_len, dtype=jnp.float32)[:, None]              # [max_len, 1]
    div_term = jnp.exp(jnp.arange(0, d_model, 2, dtype=jnp.float32)
                       * (-math.log(10000.0) / d_model))                    # [d_model/2]
    pe = jnp.zeros((max_len, d_model), dtype=jnp.float32)
    pe = pe.at[:, 0::2].set(jnp.sin(position * div_term))
    pe = pe.at[:, 1::2].set(jnp.cos(position * div_term))
    return pe.astype(dtype)


def _add_pe_kernel(x_ref, pe_ref, o_ref):
    # x_ref: (block_n, block_tc) VMEM tile, pe_ref: (1, block_tc) resident tile.
    # Pure VPU broadcast-add in the input dtype; trivially hidden under DMA.
    o_ref[...] = x_ref[...] + pe_ref[...]


# ----------------------------------------------------------------------------
# Generation-aware tiling helpers.
# ----------------------------------------------------------------------------
def _tpu_generation():
    """-> (num_tensorcores, target_block_bytes, vmem_cap_bytes)."""
    kind = ""
    try:
        kind = jax.devices()[0].device_kind.lower()
    except Exception:
        pass
    if "v7" in kind or "7x" in kind:
        # 2 TCs / chip, only 64 MiB VMEM per TC, ~3.2 TB/s HBM -> big blocks
        # matter most here; leave headroom below physical VMEM.
        num_tc, target_block, vmem_cap = 2, 8 << 20, 48 << 20
    elif "v6" in kind:
        num_tc, target_block, vmem_cap = 1, 6 << 20, 64 << 20
    else:  # v5e / unknown: conservative defaults
        num_tc, target_block, vmem_cap = 1, 4 << 20, 48 << 20
    try:
        # If the runtime can tell us the real VMEM size, never exceed ~75% of it.
        vmem_phys = pltpu.get_tpu_info().vmem_capacity_bytes
        vmem_cap = min(vmem_cap, int(vmem_phys * 0.75))
    except Exception:
        pass
    return num_tc, target_block, vmem_cap


def _sublane_pack(dtype) -> int:
    """Rows per fully-packed sublane group: 8 f32, 16 bf16, 32 int8/fp8."""
    itemsize = jnp.dtype(dtype).itemsize
    return 8 * max(1, 4 // itemsize)


def _round_up(x: int, m: int) -> int:
    return -(-x // m) * m


def _snap_to_divisor(block: int, n: int, pack: int) -> int:
    """Largest divisor of n that is a multiple of pack and <= block, if it is
    within ~75% of the budgeted block (avoids a masked tail block)."""
    best = 0
    d = pack
    while d <= block:
        if n % d == 0:
            best = d
        d += pack
    if best >= max(pack, (3 * block) // 4):
        return best
    return block


def _choose_block_tc(tc: int, itemsize: int, pack: int,
                     target_block_bytes: int) -> int:
    """Keep the full lane row unless a minimum-height block would blow the
    VMEM budget; then tile the lane axis in multiples of 128."""
    if tc < 256 or pack * tc * itemsize <= target_block_bytes:
        return tc
    block_tc = (target_block_bytes // (pack * itemsize)) // 128 * 128
    return max(128, min(block_tc, (tc // 128) * 128))


def _choose_block_n(n_rows: int, row_bytes: int, target_block_bytes: int,
                    pack: int, num_tc: int) -> int:
    """Token-axis tile: VMEM-budgeted, sublane-pack aligned, divisor-snapped;
    split only where it actually helps (2-TC v7x)."""
    if n_rows <= pack:
        return n_rows
    budget_rows = max(pack, (target_block_bytes // max(row_bytes, 1)) // pack * pack)
    if budget_rows >= n_rows:
        # Everything fits in one budgeted block.
        if num_tc >= 2 and n_rows >= 2 * pack:
            # v7x: split evenly in two so both TensorCores share the DMA work.
            return min(n_rows, _round_up(pl.cdiv(n_rows, 2), pack))
        return n_rows  # 1-TC chips: a single step, no pointless split.
    block = min(budget_rows, n_rows)
    block = _snap_to_divisor(block, n_rows, pack)
    if num_tc >= 2:
        # Prefer an even number of grid steps (balanced across the 2 TCs).
        steps = pl.cdiv(n_rows, block)
        if steps > 1 and steps % 2 == 1:
            block = min(block, max(pack, _round_up(pl.cdiv(n_rows, steps + 1), pack)))
    return block


# ----------------------------------------------------------------------------
# Forward wrapper.
# ----------------------------------------------------------------------------
def positional_encoding_forward(x: jax.Array, pe: jax.Array) -> jax.Array:
    """x: [N, T, C]; pe: [max_len, C]. Returns x + pe[:T] (dropout = eval mode)."""
    N, T, C = x.shape
    max_len = pe.shape[0]
    assert T <= max_len, f"sequence length {T} exceeds max_len {max_len}"

    TC = T * C
    dtype = x.dtype
    itemsize = jnp.dtype(dtype).itemsize

    # Hoisted one-time pe preprocessing: slice, cast, flatten to a single row.
    pe_row = pe[:T, :].astype(dtype).reshape(1, TC)
    # Lane-dense view of x: last dim becomes T*C (contiguous reshape, free).
    x2d = x.reshape(N, TC)

    num_tc, target_block_bytes, vmem_cap = _tpu_generation()
    pack = _sublane_pack(dtype)

    block_tc = _choose_block_tc(TC, itemsize, pack, target_block_bytes)
    row_bytes = block_tc * itemsize
    block_n = _choose_block_n(N, row_bytes, target_block_bytes, pack, num_tc)

    grid = (pl.cdiv(N, block_n), pl.cdiv(TC, block_tc))

    # Double-buffered input + output blocks plus the (tiny) pe block, +25%.
    block_bytes = block_n * block_tc * itemsize
    pe_bytes = block_tc * itemsize
    vmem_needed = 4 * block_bytes + 2 * pe_bytes
    vmem_limit = min(max(int(vmem_needed * 1.25), 8 << 20), vmem_cap)

    cost = pl.CostEstimate(
        flops=N * TC,
        transcendentals=0,
        bytes_accessed=2 * N * TC * itemsize + TC * itemsize)

    out2d = pl.pallas_call(
        _add_pe_kernel,
        out_shape=jax.ShapeDtypeStruct((N, TC), dtype),
        grid_spec=pltpu.PrefetchScalarGridSpec(
            num_scalar_prefetch=0,
            grid=grid,
            in_specs=[
                pl.BlockSpec((block_n, block_tc), lambda i, j: (i, j)),
                # Row-constant index_map -> pe tile stays VMEM-resident over i.
                pl.BlockSpec((1, block_tc), lambda i, j: (0, j)),
            ],
            out_specs=pl.BlockSpec((block_n, block_tc), lambda i, j: (i, j)),
        ),
        compiler_params=pltpu.CompilerParams(
            dimension_semantics=("parallel", "parallel"),
            vmem_limit_bytes=vmem_limit),
        cost_estimate=cost,
        # Let XLA reuse x's HBM buffer for the output (no extra N*T*C alloc).
        input_output_aliases={0: 0},
    )(x2d, pe_row)

    return out2d.reshape(N, T, C)


if __name__ == "__main__":
    # Small shapes consistent with the module: N = H*W = 8*8 = 64 tokens,
    # T = 5 time steps (== max_len), C = d_model = 32.
    d_model = 32
    max_len = 5
    N, T = 64, 5

    key = jax.random.PRNGKey(0)
    x = jax.random.normal(key, (N, T, d_model), dtype=jnp.float32)

    pe = make_positional_encoding_table(d_model, max_len)

    out = positional_encoding_forward(x, pe)
    out = jax.block_until_ready(out)

    # Reference check (plain JAX) — same semantics as the PyTorch forward in eval mode.
    ref = x + pe[:T, :][None, :, :]
    assert out.shape == (N, T, d_model)
    assert jnp.allclose(out, ref, atol=1e-6, rtol=1e-6)

    print("KERNEL_OK")
</pallas_src>

<mosaic_0001>
module attributes {stable_mosaic.version = 11 : i64} {
  func.func @_add_pe_kernel(%arg0: i32, %arg1: i32, %arg2: memref<64x160xf32, #tpu.memory_space<vmem>>, %arg3: memref<1x160xf32, #tpu.memory_space<vmem>>, %arg4: memref<64x160xf32, #tpu.memory_space<vmem>>) attributes {dimension_semantics = [#tpu.dimension_semantics<parallel>, #tpu.dimension_semantics<parallel>], iteration_bounds = array<i64: 1, 1>, scalar_prefetch = 0 : i64, scratch_operands = 0 : i64, tpu.core_type = #tpu.core_type<tc>, window_params = [{transform_indices = @transform_0, window_bounds = array<i64: 64, 160>}, {transform_indices = @transform_1, window_bounds = array<i64: 1, 160>}, {transform_indices = @transform_2, window_bounds = array<i64: 64, 160>}]} {
    %c0 = arith.constant 0 : index
    %c0_0 = arith.constant 0 : index
    %0 = vector.load %arg2[%c0, %c0_0] : memref<64x160xf32, #tpu.memory_space<vmem>>, vector<64x160xf32>
    %c0_1 = arith.constant 0 : index
    %c0_2 = arith.constant 0 : index
    %1 = vector.load %arg3[%c0_1, %c0_2] : memref<1x160xf32, #tpu.memory_space<vmem>>, vector<1x160xf32>
    %2 = vector.broadcast %1 : vector<1x160xf32> to vector<64x160xf32>
    %3 = arith.addf %0, %2 : vector<64x160xf32>
    %c0_3 = arith.constant 0 : index
    %c0_4 = arith.constant 0 : index
    %4 = vector.load %arg4[%c0_3, %c0_4] : memref<64x160xf32, #tpu.memory_space<vmem>>, vector<64x160xf32>
    tpu.vector_store %arg4[%c0_3, %c0_4], %3 {strides = array<i32>} : memref<64x160xf32, #tpu.memory_space<vmem>>, vector<64x160xf32>,
    return
  }
  func.func @transform_0(%arg0: i32, %arg1: i32) -> (i32, i32) {
    %c0_i32 = arith.constant 0 : i32
    return %arg0, %arg1 : i32, i32
  }
  func.func @transform_1(%arg0: i32, %arg1: i32) -> (i32, i32) {
    %c0_i32 = arith.constant 0 : i32
    %c0_i32_0 = arith.constant 0 : i32
    return %c0_i32, %arg1 : i32, i32
  }
  func.func @transform_2(%arg0: i32, %arg1: i32) -> (i32, i32) {
    %c0_i32 = arith.constant 0 : i32
    return %arg0, %arg1 : i32, i32
  }
}

</mosaic_0001>

<llo_original>
// kernel: tpu_custom_call.1
$region0: #{tpu_custom_call.1}
  #allocation0 [shape = 'u32[]', space=smem, size = 0x4, offset = 0x4, fixed_abs, tag = 'smem constant byte address 0x4 - core index']
  #allocation1 [shape = 'u32[144,128]{1,0:T(1,128)}', space=vmem, size = 0x12000, scoped, tag = 'internal scratch']
  %s0 = inlined_call_operand.hbm [shape: f32[64,160], index: 0, kind: input, shape index: {}, may-alias: {0,2}]
  %s1 = inlined_call_operand.vmem [shape: f32[1,160], index: 1, kind: input, shape index: {}]
  %s2 = inlined_call_operand.hbm [shape: f32[64,160], index: 2, kind: output, shape index: {}, may-alias: {0,2}]
  %s3 = sld [smem:[#allocation0]]
  $region22: #{tpu_custom_call.1} parent=0
    _
  %s5 = ssub.s32 1, %s3
  %s6 = scalar_select 0, %s5, %s3
  $region1: #{tpu_custom_call.1} parent=0
    #allocation2 [shape = 'u8[65536]{0}', space=vmem, size = 0x10000, scoped, tag = 'input window, operand 0, single buffered']
    #allocation3 [shape = 's32[1]{0}', space=sflag, size = 0x4, scoped, tag = 'scoped memory for tpu_custom_call.1']
    #allocation4 [shape = 's32[1]{0}', space=sflag, size = 0x4, scoped, tag = 'scoped memory for tpu_custom_call.1']
    #allocation5 [shape = 'u8[65536]{0}', space=vmem, size = 0x10000, scoped, tag = 'output window, operand 0, single buffered']
    %7 = vsyncpa [#allocation3], 0
    %8 = vsyncpa [#allocation4], 0
    // Predicated region
    $region2: #{tpu_custom_call.1} parent=1 // pred_check
      _
    $region3: #{tpu_custom_call.1} parent=1 // pred_check_branch
      %10 = sbr.rel (0) target = $region5
    $region4: #{tpu_custom_call.1} parent=1 // pred_region
      %s12 = ssub.s32 2048, 2048
      %13 = vsyncadd [#allocation3], %s12
      %s14 = sshll.u32 [#allocation2], 4
      %s15 = int_to_ptr.vmem [resolvable:$true] %s14
      %20 = dma.hbm_to_vmem [thread:$0]  %s0, 2048, %s15, [#allocation3], 256, 256, 16
    $region5: #{tpu_custom_call.1} parent=1 // pred_fallthru
      _
    // Predicated region
    $region6: #{tpu_custom_call.1} parent=1 // pred_check
      _
    $region7: #{tpu_custom_call.1} parent=1 // pred_check_branch
      %22 = sbr.rel (0) target = $region9
    $region8: #{tpu_custom_call.1} parent=1 // pred_region
      _
    $region9: #{tpu_custom_call.1} parent=1 // pred_fallthru
      _
    // Predicated region
    $region10: #{tpu_custom_call.1} parent=1 // pred_check
      _
    $region11: #{tpu_custom_call.1} parent=1 // pred_check_branch
      %24 = sbr.rel (0) target = $region13
    $region12: #{tpu_custom_call.1} parent=1 // pred_region
      %25 = dma.done [#allocation3], 2048
    $region13: #{tpu_custom_call.1} parent=1 // pred_fallthru
      _
    %v26 = vld [vmem:[#allocation2] sm:$0xff]
    %v27 = vld [vmem:[#allocation2 + $0x8] sm:$0xff]
    %v28 = vld [vmem:[#allocation2 + $0x10] sm:$0xff]
    %v29 = vld [vmem:[#allocation2 + $0x18] sm:$0xff]
    %v30 = vld [vmem:[#allocation2 + $0x20] sm:$0xff]
    %v31 = vld [vmem:[#allocation2 + $0x28] sm:$0xff]
    %v32 = vld [vmem:[#allocation2 + $0x30] sm:$0xff]
    %v33 = vld [vmem:[#allocation2 + $0x38] sm:$0xff]
    %v34 = vld [vmem:[#allocation2 + $0x40] sm:$0xff]
    %v35 = vld [vmem:[#allocation2 + $0x48] sm:$0xff]
    %v36 = vld [vmem:[#allocation2 + $0x50] sm:$0xff]
    %v37 = vld [vmem:[#allocation2 + $0x58] sm:$0xff]
    %v38 = vld [vmem:[#allocation2 + $0x60] sm:$0xff]
    %v39 = vld [vmem:[#allocation2 + $0x68] sm:$0xff]
    %v40 = vld [vmem:[#allocation2 + $0x70] sm:$0xff]
    %v41 = vld [vmem:[#allocation2 + $0x78] sm:$0xff]
    %v42 = vld [vmem:[%s1] sm:$0x3]
    %v44 = vlaneseq
    %v45 = vshrl.u32 %v44, 7
    %v46 = vsub.s32 0, %v45
    %v47 = vrot.slane %v42, %v46
    %v48 = vlaneseq
    %v49 = vshrl.u32 %v48, 7
    %v50 = vsub.s32 1, %v49
    %v51 = vrot.slane %v42, %v50
    %v54 = vadd.f32 %v26, %v47
    %v55 = vadd.f32 %v27, %v51
    %v56 = vadd.f32 %v28, %v47
    %v57 = vadd.f32 %v29, %v51
    %v58 = vadd.f32 %v30, %v47
    %v59 = vadd.f32 %v31, %v51
    %v60 = vadd.f32 %v32, %v47
    %v61 = vadd.f32 %v33, %v51
    %v62 = vadd.f32 %v34, %v47
    %v63 = vadd.f32 %v35, %v51
    %v64 = vadd.f32 %v36, %v47
    %v65 = vadd.f32 %v37, %v51
    %v66 = vadd.f32 %v38, %v47
    %v67 = vadd.f32 %v39, %v51
    %v68 = vadd.f32 %v40, %v47
    %v69 = vadd.f32 %v41, %v51
    %70 = vst [vmem:[#allocation5] sm:$0xff] %v54
    %vm71 = vcmask 261120
    %72 = vst.msk [vmem:[#allocation5 + $0x8] sm:$0xff] %vm71, %v55
    %73 = vst [vmem:[#allocation5 + $0x10] sm:$0xff] %v56
    %74 = vst.msk [vmem:[#allocation5 + $0x18] sm:$0xff] %vm71, %v57
    %75 = vst [vmem:[#allocation5 + $0x20] sm:$0xff] %v58
    %76 = vst.msk [vmem:[#allocation5 + $0x28] sm:$0xff] %vm71, %v59
    %77 = vst [vmem:[#allocation5 + $0x30] sm:$0xff] %v60
    %78 = vst.msk [vmem:[#allocation5 + $0x38] sm:$0xff] %vm71, %v61
    %79 = vst [vmem:[#allocation5 + $0x40] sm:$0xff] %v62
    %80 = vst.msk [vmem:[#allocation5 + $0x48] sm:$0xff] %vm71, %v63
    %81 = vst [vmem:[#allocation5 + $0x50] sm:$0xff] %v64
    %82 = vst.msk [vmem:[#allocation5 + $0x58] sm:$0xff] %vm71, %v65
    %83 = vst [vmem:[#allocation5 + $0x60] sm:$0xff] %v66
    %84 = vst.msk [vmem:[#allocation5 + $0x68] sm:$0xff] %vm71, %v67
    %85 = vst [vmem:[#allocation5 + $0x70] sm:$0xff] %v68
    %86 = vst.msk [vmem:[#allocation5 + $0x78] sm:$0xff] %vm71, %v69
    // Predicated region
    $region14: #{tpu_custom_call.1} parent=1 // pred_check
      _
    $region15: #{tpu_custom_call.1} parent=1 // pred_check_branch
      %88 = sbr.rel (0) target = $region17
    $region16: #{tpu_custom_call.1} parent=1 // pred_region
      %s90 = ssub.s32 2048, 2048
      %91 = vsyncadd [#allocation4], %s90
      %s92 = sshll.u32 [#allocation5], 4
      %s93 = int_to_ptr.vmem [resolvable:$true] %s92
      %98 = dma.vmem_to_hbm [thread:$0]  %s93, 2048, %s2, [#allocation4], 256, 256, 16
    $region17: #{tpu_custom_call.1} parent=1 // pred_fallthru
      _
    // Predicated region
    $region18: #{tpu_custom_call.1} parent=1 // pred_check
      _
    $region19: #{tpu_custom_call.1} parent=1 // pred_check_branch
      %100 = sbr.rel (0) target = $region21
    $region20: #{tpu_custom_call.1} parent=1 // pred_region
      %101 = dma.done [#allocation4], 2048
    $region21: #{tpu_custom_call.1} parent=1 // pred_fallthru
      _
    %102 = vsyncpa [#allocation3], 1
    %103 = vsyncpa [#allocation4], 1

</llo_original>
